<compile_context>
chip_gen: v7x
topology: tpu7x:2x2x1
jax: 0.10.0
libtpu: 0.0.40
codegen_flags: <defaults>
</compile_context>

<pallas_src>
import functools

import jax
import jax.numpy as jnp
import numpy as np
from jax import lax
from jax.experimental import pallas as pl
from jax.experimental.pallas import tpu as pltpu

IMG_SIZE = 32
NUM_CLASSES = 10
LEAKY_SLOPE = 0.2
BN_EPS = 1e-5


# ----------------------------------------------------------------------------
# Generic Pallas kernel: (patch) matmul + bias + optional LeakyReLU.
# ----------------------------------------------------------------------------
def _linear_act_kernel(x_ref, w_ref, b_ref, o_ref, *, slope):
    # bf16 x bf16 -> fp32 accumulation on the MXU.
    acc = jnp.dot(x_ref[...], w_ref[...], preferred_element_type=jnp.float32)
    acc = acc + b_ref[...]
    if slope is not None:
        acc = jnp.where(acc >= 0, acc, slope * acc)
    o_ref[...] = acc.astype(o_ref.dtype)


def _row_tile(rows):
    """Largest tile <= 512 that divides `rows` (>=512 rows preferred per review)."""
    for t in (512, 256, 128, 64, 32, 16, 8):
        if rows % t == 0:
            return t
    return rows  # tiny case: single full-extent block (allowed by BlockSpec rules)


def pallas_linear(x, w, b, *, slope=None):
    """x: [R, K] bf16, w: [K, N] bf16 (VMEM-resident), b: [1, N] f32 -> [R, N] f32."""
    R, K = x.shape
    Kw, N = w.shape
    assert K == Kw and b.shape == (1, N)
    tr = _row_tile(R)
    grid = (R // tr,)

    flops = 2 * R * K * N
    bytes_accessed = (x.size * x.dtype.itemsize + w.size * w.dtype.itemsize
                      + b.size * b.dtype.itemsize + R * N * 4)

    return pl.pallas_call(
        functools.partial(_linear_act_kernel, slope=slope),
        out_shape=jax.ShapeDtypeStruct((R, N), jnp.float32),
        grid_spec=pltpu.PrefetchScalarGridSpec(
            num_scalar_prefetch=0,
            grid=grid,
            in_specs=[
                pl.BlockSpec((tr, K), lambda i: (i, 0)),   # activation tile (pipelined)
                pl.BlockSpec((K, N), lambda i: (0, 0)),    # weight: loaded once, resident
                pl.BlockSpec((1, N), lambda i: (0, 0)),    # bias:   loaded once, resident
            ],
            out_specs=pl.BlockSpec((tr, N), lambda i: (i, 0)),
        ),
        compiler_params=pltpu.CompilerParams(
            dimension_semantics=("parallel",)),            # v7x: shard rows over 2 TCs
        cost_estimate=pl.CostEstimate(
            flops=flops, transcendentals=0, bytes_accessed=bytes_accessed),
    )(x, w, b)


# ----------------------------------------------------------------------------
# Wrapper-side layout helpers (im2col, weight flattening, BN folding, padding).
# ----------------------------------------------------------------------------
def _im2col_k4s2p1(x):
    """x: [B, H, W, C] (NHWC) -> patches [B*OH*OW, 16*C] for a 4x4/s2/p1 conv."""
    B, H, W, C = x.shape
    OH, OW = H // 2, W // 2
    xp = jnp.pad(x, ((0, 0), (1, 1), (1, 1), (0, 0)))
    cols = []
    for kh in range(4):
        for kw in range(4):
            cols.append(lax.slice(
                xp,
                (0, kh, kw, 0),
                (B, kh + 2 * OH - 1, kw + 2 * OW - 1, C),
                (1, 2, 2, 1)))
    patches = jnp.stack(cols, axis=3)                       # [B, OH, OW, 16, C]
    return patches.reshape(B * OH * OW, 16 * C), (B, OH, OW)


def _flatten_conv_weight(w_oihw):
    """[OC, IC, KH, KW] -> [KH*KW*IC, OC], matching the im2col column ordering."""
    oc, ic, kh, kw = w_oihw.shape
    return jnp.transpose(w_oihw, (2, 3, 1, 0)).reshape(kh * kw * ic, oc)


def _pad_axis_to(x, axis, target):
    pad = target - x.shape[axis]
    if pad <= 0:
        return x
    widths = [(0, 0)] * x.ndim
    widths[axis] = (0, pad)
    return jnp.pad(x, widths)


def _fold_bn(w_oihw, b, gamma, beta, mean, var, eps=BN_EPS):
    """Fold eval-mode BatchNorm into the preceding conv's weight/bias."""
    scale = gamma / jnp.sqrt(var + eps)
    return w_oihw * scale[:, None, None, None], (b - mean) * scale + beta


def init_params(key, in_channels=1, num_classes=NUM_CLASSES):
    """Matches ConvCDiscriminator.init_weights: W ~ N(0, 0.02), bias = 0."""
    def conv_w(k, oc, ic):
        return 0.02 * jax.random.normal(k, (oc, ic, 4, 4), jnp.float32)

    ks = jax.random.split(key, 9)
    return {
        "conv1_w": conv_w(ks[0], 32, in_channels), "conv1_b": jnp.zeros((32,), jnp.float32),
        "convl_w": conv_w(ks[1], 32, num_classes), "convl_b": jnp.zeros((32,), jnp.float32),
        "conv2_w": conv_w(ks[2], 128, 64),         "conv2_b": jnp.zeros((128,), jnp.float32),
        "conv3_w": conv_w(ks[3], 256, 128),        "conv3_b": jnp.zeros((256,), jnp.float32),
        "convo_w": conv_w(ks[4], 1, 256),          "convo_b": jnp.zeros((1,), jnp.float32),
        # Eval-mode BatchNorm params (slightly randomized so folding is exercised;
        # PyTorch defaults are gamma=1, beta=0, mean=0, var=1).
        "bn2_gamma": 1.0 + 0.05 * jax.random.normal(ks[5], (128,), jnp.float32),
        "bn2_beta": 0.05 * jax.random.normal(ks[6], (128,), jnp.float32),
        "bn2_mean": jnp.zeros((128,), jnp.float32),
        "bn2_var": jnp.ones((128,), jnp.float32),
        "bn3_gamma": 1.0 + 0.05 * jax.random.normal(ks[7], (256,), jnp.float32),
        "bn3_beta": 0.05 * jax.random.normal(ks[8], (256,), jnp.float32),
        "bn3_mean": jnp.zeros((256,), jnp.float32),
        "bn3_var": jnp.ones((256,), jnp.float32),
    }


def prepare_kernel_params(p, in_channels=1, num_classes=NUM_CLASSES):
    """Fold BN, fuse conv_1/conv_label via a block-diagonal weight, flatten to
    im2col layout, pad to lane-friendly shapes, cast weights to bf16."""
    c_all = in_channels + num_classes

    # Stage 1: combined conv over [img | label-planes] channels -> 64 outputs.
    w_s1 = jnp.zeros((64, c_all, 4, 4), jnp.float32)
    w_s1 = w_s1.at[:32, :in_channels].set(p["conv1_w"])
    w_s1 = w_s1.at[32:, in_channels:].set(p["convl_w"])
    b_s1 = jnp.concatenate([p["conv1_b"], p["convl_b"]])

    w2, b2 = _fold_bn(p["conv2_w"], p["conv2_b"], p["bn2_gamma"], p["bn2_beta"],
                      p["bn2_mean"], p["bn2_var"])
    w3, b3 = _fold_bn(p["conv3_w"], p["conv3_b"], p["bn3_gamma"], p["bn3_beta"],
                      p["bn3_mean"], p["bn3_var"])

    w1f = _pad_axis_to(_flatten_conv_weight(w_s1), 0, 256)           # [176,64] -> [256,64]
    w2f = _flatten_conv_weight(w2)                                    # [1024,128]
    w3f = _flatten_conv_weight(w3)                                    # [2048,256]
    w4f = _pad_axis_to(_flatten_conv_weight(p["convo_w"]), 1, 128)    # [4096,1] -> [4096,128]
    b4f = _pad_axis_to(p["convo_b"][None, :], 1, 128)                 # [1,1]    -> [1,128]

    return {
        "w1": w1f.astype(jnp.bfloat16), "b1": b_s1[None, :],
        "w2": w2f.astype(jnp.bfloat16), "b2": b2[None, :],
        "w3": w3f.astype(jnp.bfloat16), "b3": b3[None, :],
        "w4": w4f.astype(jnp.bfloat16), "b4": b4f,
    }


# ----------------------------------------------------------------------------
# Forward pass (Pallas path).
# ----------------------------------------------------------------------------
def convc_discriminator_forward(imgs, cond_class, kparams,
                                in_channels=1, num_classes=NUM_CLASSES):
    """imgs: [B, C, H, W] f32 (NCHW), cond_class: [B] int. Returns [B, 1] logits."""
    B = imgs.shape[0]
    if imgs.shape[2] != IMG_SIZE or imgs.shape[3] != IMG_SIZE:
        # transforms.Resize(32); TODO(synk): exact torchvision antialias semantics.
        imgs = jax.image.resize(imgs, (B, in_channels, IMG_SIZE, IMG_SIZE),
                                method="bilinear")
    x_img = jnp.transpose(imgs, (0, 2, 3, 1))                          # NHWC
    onehot = jax.nn.one_hot(cond_class, num_classes, dtype=jnp.float32)
    x_lbl = jnp.broadcast_to(onehot[:, None, None, :],
                             (B, IMG_SIZE, IMG_SIZE, num_classes))
    x = jnp.concatenate([x_img, x_lbl], axis=-1)                       # [B,32,32,11]

    # Stage 1: conv_1 + conv_label (fused), LeakyReLU(0.2) -> [B,16,16,64]
    p1, (_, oh, ow) = _im2col_k4s2p1(x)                                # [B*256, 176]
    p1 = _pad_axis_to(p1, 1, kparams["w1"].shape[0]).astype(jnp.bfloat16)
    h1 = pallas_linear(p1, kparams["w1"], kparams["b1"], slope=LEAKY_SLOPE)
    h1 = h1.reshape(B, oh, ow, 64)

    # Stage 2: conv_2 + bn_2 (folded) + LeakyReLU -> [B,8,8,128]
    p2, (_, oh, ow) = _im2col_k4s2p1(h1)                               # [B*64, 1024]
    h2 = pallas_linear(p2.astype(jnp.bfloat16), kparams["w2"], kparams["b2"],
                       slope=LEAKY_SLOPE).reshape(B, oh, ow, 128)

    # Stage 3: conv_3 + bn_3 (folded) + LeakyReLU -> [B,4,4,256]
    p3, (_, oh, ow) = _im2col_k4s2p1(h2)                               # [B*16, 2048]
    h3 = pallas_linear(p3.astype(jnp.bfloat16), kparams["w3"], kparams["b3"],
                       slope=LEAKY_SLOPE).reshape(B, oh, ow, 256)

    # Stage 4: conv_out (4x4 VALID conv == dense layer). Output padded to 128
    # lanes for a lane-dense store, then sliced back to 1 logit per image.
    p4 = h3.reshape(B, 4 * 4 * 256).astype(jnp.bfloat16)               # [B, 4096]
    out = pallas_linear(p4, kparams["w4"], kparams["b4"], slope=None)  # [B, 128]
    return out[:, :1]                                                  # [B, 1]


# ----------------------------------------------------------------------------
# Pure-JAX reference (lax.conv path, same bf16-in / fp32-accum precision).
# ----------------------------------------------------------------------------
def _conv_ref(x_nhwc, w_oihw, b, stride, padding):
    y = lax.conv_general_dilated(
        x_nhwc.astype(jnp.bfloat16), w_oihw.astype(jnp.bfloat16),
        window_strides=(stride, stride), padding=padding,
        dimension_numbers=("NHWC", "OIHW", "NHWC"),
        preferred_element_type=jnp.float32)
    return y + b[None, None, None, :]


def reference_forward(imgs, cond_class, p, in_channels=1, num_classes=NUM_CLASSES):
    B = imgs.shape[0]
    if imgs.shape[2] != IMG_SIZE or imgs.shape[3] != IMG_SIZE:
        imgs = jax.image.resize(imgs, (B, in_channels, IMG_SIZE, IMG_SIZE),
                                method="bilinear")
    x_img = jnp.transpose(imgs, (0, 2, 3, 1))
    onehot = jax.nn.one_hot(cond_class, num_classes, dtype=jnp.float32)
    x_lbl = jnp.broadcast_to(onehot[:, None, None, :],
                             (B, IMG_SIZE, IMG_SIZE, num_classes))
    leaky = lambda v: jnp.where(v >= 0, v, LEAKY_SLOPE * v)

    h_img = leaky(_conv_ref(x_img, p["conv1_w"], p["conv1_b"], 2, ((1, 1), (1, 1))))
    h_lbl = leaky(_conv_ref(x_lbl, p["convl_w"], p["convl_b"], 2, ((1, 1), (1, 1))))
    h1 = jnp.concatenate([h_img, h_lbl], axis=-1)

    w2, b2 = _fold_bn(p["conv2_w"], p["conv2_b"], p["bn2_gamma"], p["bn2_beta"],
                      p["bn2_mean"], p["bn2_var"])
    h2 = leaky(_conv_ref(h1, w2, b2, 2, ((1, 1), (1, 1))))
    w3, b3 = _fold_bn(p["conv3_w"], p["conv3_b"], p["bn3_gamma"], p["bn3_beta"],
                      p["bn3_mean"], p["bn3_var"])
    h3 = leaky(_conv_ref(h2, w3, b3, 2, ((1, 1), (1, 1))))
    out = _conv_ref(h3, p["convo_w"], p["convo_b"], 1, "VALID")        # [B,1,1,1]
    return out.reshape(B, -1)


if __name__ == "__main__":
    key = jax.random.PRNGKey(0)
    k_img, k_lbl, k_par = jax.random.split(key, 3)

    # Default input_size=(1, 28, 28); the module resizes to 32x32 internally.
    B, C, H, W = 2, 1, 28, 28
    imgs = jax.random.normal(k_img, (B, C, H, W), jnp.float32)
    cond_class = jax.random.randint(k_lbl, (B,), 0, NUM_CLASSES)

    params = init_params(k_par, in_channels=C)
    kparams = prepare_kernel_params(params, in_channels=C)

    logits = convc_discriminator_forward(imgs, cond_class, kparams, in_channels=C)
    logits = jax.block_until_ready(logits)
    assert logits.shape == (B, 1)

    ref = reference_forward(imgs, cond_class, params, in_channels=C)
    np.testing.assert_allclose(np.asarray(logits), np.asarray(ref),
                               rtol=1e-2, atol=1e-3)

    print("KERNEL_OK")
</pallas_src>

<mosaic_0001>
module attributes {stable_mosaic.version = 11 : i64} {
  func.func @_linear_act_kernel(%arg0: i32, %arg1: memref<512x256xbf16, #tpu.memory_space<vmem>>, %arg2: memref<256x64xbf16, #tpu.memory_space<vmem>>, %arg3: memref<1x64xf32, #tpu.memory_space<vmem>>, %arg4: memref<512x64xf32, #tpu.memory_space<vmem>>) attributes {dimension_semantics = [#tpu.dimension_semantics<parallel>], iteration_bounds = array<i64: 1>, scalar_prefetch = 0 : i64, scratch_operands = 0 : i64, tpu.core_type = #tpu.core_type<tc>, window_params = [{transform_indices = @transform_0, window_bounds = array<i64: 512, 256>}, {pipeline_mode = #tpu.pipeline_mode<synchronous>, transform_indices = @transform_1, window_bounds = array<i64: 256, 64>}, {pipeline_mode = #tpu.pipeline_mode<synchronous>, transform_indices = @transform_2, window_bounds = array<i64: 1, 64>}, {transform_indices = @transform_3, window_bounds = array<i64: 512, 64>}]} {
    %c0 = arith.constant 0 : index
    %c0_0 = arith.constant 0 : index
    %0 = vector.load %arg1[%c0, %c0_0] : memref<512x256xbf16, #tpu.memory_space<vmem>>, vector<512x256xbf16>
    %c0_1 = arith.constant 0 : index
    %c0_2 = arith.constant 0 : index
    %1 = vector.load %arg2[%c0_1, %c0_2] : memref<256x64xbf16, #tpu.memory_space<vmem>>, vector<256x64xbf16>
    %cst = arith.constant dense<0.000000e+00> : vector<512x64xf32>
    %2 = tpu.matmul %0, %1, %cst {dimension_numbers = #tpu.dot_dimension_numbers<[1], [0], [0], [1], [0, 0, 1, 1], [], []>} : vector<512x256xbf16>, vector<256x64xbf16>, vector<512x64xf32> -> vector<512x64xf32>
    %c0_3 = arith.constant 0 : index
    %c0_4 = arith.constant 0 : index
    %3 = vector.load %arg3[%c0_3, %c0_4] : memref<1x64xf32, #tpu.memory_space<vmem>>, vector<1x64xf32>
    %4 = vector.broadcast %3 : vector<1x64xf32> to vector<512x64xf32>
    %5 = arith.addf %2, %4 : vector<512x64xf32>
    %cst_5 = arith.constant 0.000000e+00 : f32
    %6 = vector.broadcast %cst_5 : f32 to vector<512x64xf32>
    %7 = arith.cmpf oge, %5, %6 : vector<512x64xf32>
    %cst_6 = arith.constant 2.000000e-01 : f32
    %8 = vector.broadcast %cst_6 : f32 to vector<512x64xf32>
    %9 = arith.mulf %8, %5 : vector<512x64xf32>
    %10 = arith.select %7, %5, %9 : vector<512x64xi1>, vector<512x64xf32>
    %c0_7 = arith.constant 0 : index
    %c0_8 = arith.constant 0 : index
    %11 = vector.load %arg4[%c0_7, %c0_8] : memref<512x64xf32, #tpu.memory_space<vmem>>, vector<512x64xf32>
    tpu.vector_store %arg4[%c0_7, %c0_8], %10 {strides = array<i32>} : memref<512x64xf32, #tpu.memory_space<vmem>>, vector<512x64xf32>,
    return
  }
  func.func @transform_0(%arg0: i32) -> (i32, i32) {
    %c0_i32 = arith.constant 0 : i32
    %c0_i32_0 = arith.constant 0 : i32
    return %arg0, %c0_i32 : i32, i32
  }
  func.func @transform_1(%arg0: i32) -> (i32, i32) {
    %c0_i32 = arith.constant 0 : i32
    %c0_i32_0 = arith.constant 0 : i32
    %c0_i32_1 = arith.constant 0 : i32
    return %c0_i32, %c0_i32_0 : i32, i32
  }
  func.func @transform_2(%arg0: i32) -> (i32, i32) {
    %c0_i32 = arith.constant 0 : i32
    %c0_i32_0 = arith.constant 0 : i32
    %c0_i32_1 = arith.constant 0 : i32
    return %c0_i32, %c0_i32_0 : i32, i32
  }
  func.func @transform_3(%arg0: i32) -> (i32, i32) {
    %c0_i32 = arith.constant 0 : i32
    %c0_i32_0 = arith.constant 0 : i32
    return %arg0, %c0_i32 : i32, i32
  }
}

</mosaic_0001>

<llo_original>
// kernel: tpu_custom_call.1
$region0: #{tpu_custom_call.1}
  #allocation0 [shape = 'u32[]', space=smem, size = 0x4, offset = 0x4, fixed_abs, tag = 'smem constant byte address 0x4 - core index']
  #allocation1 [shape = 'u32[144,128]{1,0:T(1,128)}', space=vmem, size = 0x12000, scoped, tag = 'internal scratch']
  %s0 = inlined_call_operand.hbm [shape: bf16[512,256], index: 0, kind: input, shape index: {}]
  %s1 = inlined_call_operand.vmem [shape: bf16[256,64], index: 1, kind: input, shape index: {}]
  %s2 = inlined_call_operand.vmem [shape: f32[1,64], index: 2, kind: input, shape index: {}]
  %s3 = inlined_call_operand.vmem [shape: f32[512,64], index: 3, kind: output, shape index: {}]
  %s4 = sld [smem:[#allocation0]]
  $region26: #{tpu_custom_call.1} parent=0
    _
  %s6 = ssub.s32 1, %s4
  %s7 = scalar_select 0, %s6, %s4
  $region1: #{tpu_custom_call.1} parent=0
    #allocation2 [shape = 'u8[262144]{0}', space=vmem, size = 0x40000, scoped, tag = 'input window, operand 0, single buffered']
    #allocation3 [shape = 's32[1]{0}', space=sflag, size = 0x4, scoped, tag = 'scoped memory for tpu_custom_call.1']
    %8 = vsyncpa [#allocation3], 0
    // Predicated region
    $region2: #{tpu_custom_call.1} parent=1 // pred_check
      _
    $region3: #{tpu_custom_call.1} parent=1 // pred_check_branch
      %10 = sbr.rel (0) target = $region5
    $region4: #{tpu_custom_call.1} parent=1 // pred_region
      %s12 = ssub.s32 8192, 8192
      %13 = vsyncadd [#allocation3], %s12
      %s14 = sshll.u32 [#allocation2], 4
      %s15 = int_to_ptr.vmem [resolvable:$true] %s14
      %20 = dma.hbm_to_vmem [thread:$0]  %s0, 8192, %s15, [#allocation3], 128, 128, 8
    $region5: #{tpu_custom_call.1} parent=1 // pred_fallthru
      _
    // Predicated region
    $region6: #{tpu_custom_call.1} parent=1 // pred_check
      _
    $region7: #{tpu_custom_call.1} parent=1 // pred_check_branch
      %22 = sbr.rel (0) target = $region9
    $region8: #{tpu_custom_call.1} parent=1 // pred_region
      _
    $region9: #{tpu_custom_call.1} parent=1 // pred_fallthru
      _
    // Predicated region
    $region10: #{tpu_custom_call.1} parent=1 // pred_check
      _
    $region11: #{tpu_custom_call.1} parent=1 // pred_check_branch
      %24 = sbr.rel (0) target = $region13
    $region12: #{tpu_custom_call.1} parent=1 // pred_region
      _
    $region13: #{tpu_custom_call.1} parent=1 // pred_fallthru
      _
    // Predicated region
    $region14: #{tpu_custom_call.1} parent=1 // pred_check
      _
    $region15: #{tpu_custom_call.1} parent=1 // pred_check_branch
      %26 = sbr.rel (0) target = $region17
    $region16: #{tpu_custom_call.1} parent=1 // pred_region
      %27 = dma.done [#allocation3], 8192
    $region17: #{tpu_custom_call.1} parent=1 // pred_fallthru
      _
    %v29 = vld [vmem:[#allocation2] sm:$0xff]
    %v30 = vld [vmem:[#allocation2 + $0x8] sm:$0xff]
    %v31 = vld [vmem:[#allocation2 + $0x10] sm:$0xff]
    %v32 = vld [vmem:[#allocation2 + $0x18] sm:$0xff]
    %v33 = vld [vmem:[#allocation2 + $0x20] sm:$0xff]
    %v34 = vld [vmem:[#allocation2 + $0x28] sm:$0xff]
    %v35 = vld [vmem:[#allocation2 + $0x30] sm:$0xff]
    %v36 = vld [vmem:[#allocation2 + $0x38] sm:$0xff]
    %v37 = vld [vmem:[#allocation2 + $0x40] sm:$0xff]
    %v38 = vld [vmem:[#allocation2 + $0x48] sm:$0xff]
    %v39 = vld [vmem:[#allocation2 + $0x50] sm:$0xff]
    %v40 = vld [vmem:[#allocation2 + $0x58] sm:$0xff]
    %v41 = vld [vmem:[#allocation2 + $0x60] sm:$0xff]
    %v42 = vld [vmem:[#allocation2 + $0x68] sm:$0xff]
    %v43 = vld [vmem:[#allocation2 + $0x70] sm:$0xff]
    %v44 = vld [vmem:[#allocation2 + $0x78] sm:$0xff]
    %v45 = vld [vmem:[#allocation2 + $0x80] sm:$0xff]
    %v46 = vld [vmem:[#allocation2 + $0x88] sm:$0xff]
    %v47 = vld [vmem:[#allocation2 + $0x90] sm:$0xff]
    %v48 = vld [vmem:[#allocation2 + $0x98] sm:$0xff]
    %v49 = vld [vmem:[#allocation2 + $0xa0] sm:$0xff]
    %v50 = vld [vmem:[#allocation2 + $0xa8] sm:$0xff]
    %v51 = vld [vmem:[#allocation2 + $0xb0] sm:$0xff]
    %v52 = vld [vmem:[#allocation2 + $0xb8] sm:$0xff]
    %v53 = vld [vmem:[#allocation2 + $0xc0] sm:$0xff]
    %v54 = vld [vmem:[#allocation2 + $0xc8] sm:$0xff]
    %v55 = vld [vmem:[#allocation2 + $0xd0] sm:$0xff]
    %v56 = vld [vmem:[#allocation2 + $0xd8] sm:$0xff]
    %v57 = vld [vmem:[#allocation2 + $0xe0] sm:$0xff]
    %v58 = vld [vmem:[#allocation2 + $0xe8] sm:$0xff]
    %v59 = vld [vmem:[#allocation2 + $0xf0] sm:$0xff]
    %v60 = vld [vmem:[#allocation2 + $0xf8] sm:$0xff]
    %v61 = vld [vmem:[#allocation2 + $0x100] sm:$0xff]
    %v62 = vld [vmem:[#allocation2 + $0x108] sm:$0xff]
    %v63 = vld [vmem:[#allocation2 + $0x110] sm:$0xff]
    %v64 = vld [vmem:[#allocation2 + $0x118] sm:$0xff]
    %v65 = vld [vmem:[#allocation2 + $0x120] sm:$0xff]
    %v66 = vld [vmem:[#allocation2 + $0x128] sm:$0xff]
    %v67 = vld [vmem:[#allocation2 + $0x130] sm:$0xff]
    %v68 = vld [vmem:[#allocation2 + $0x138] sm:$0xff]
    %v69 = vld [vmem:[#allocation2 + $0x140] sm:$0xff]
    %v70 = vld [vmem:[#allocation2 + $0x148] sm:$0xff]
    %v71 = vld [vmem:[#allocation2 + $0x150] sm:$0xff]
    %v72 = vld [vmem:[#allocation2 + $0x158] sm:$0xff]
    %v73 = vld [vmem:[#allocation2 + $0x160] sm:$0xff]
    %v74 = vld [vmem:[#allocation2 + $0x168] sm:$0xff]
    %v75 = vld [vmem:[#allocation2 + $0x170] sm:$0xff]
    %v76 = vld [vmem:[#allocation2 + $0x178] sm:$0xff]
    %v77 = vld [vmem:[#allocation2 + $0x180] sm:$0xff]
    %v78 = vld [vmem:[#allocation2 + $0x188] sm:$0xff]
    %v79 = vld [vmem:[#allocation2 + $0x190] sm:$0xff]
    %v80 = vld [vmem:[#allocation2 + $0x198] sm:$0xff]
    %v81 = vld [vmem:[#allocation2 + $0x1a0] sm:$0xff]
    %v82 = vld [vmem:[#allocation2 + $0x1a8] sm:$0xff]
    %v83 = vld [vmem:[#allocation2 + $0x1b0] sm:$0xff]
    %v84 = vld [vmem:[#allocation2 + $0x1b8] sm:$0xff]
    %v85 = vld [vmem:[#allocation2 + $0x1c0] sm:$0xff]
    %v86 = vld [vmem:[#allocation2 + $0x1c8] sm:$0xff]
    %v87 = vld [vmem:[#allocation2 + $0x1d0] sm:$0xff]
    %v88 = vld [vmem:[#allocation2 + $0x1d8] sm:$0xff]
    %v89 = vld [vmem:[#allocation2 + $0x1e0] sm:$0xff]
    %v90 = vld [vmem:[#allocation2 + $0x1e8] sm:$0xff]
    %v91 = vld [vmem:[#allocation2 + $0x1f0] sm:$0xff]
    %v92 = vld [vmem:[#allocation2 + $0x1f8] sm:$0xff]
    %v93 = vld [vmem:[%s1] sm:$0xf]
    %v94 = vld [vmem:[%s1 + $0x4] sm:$0xf]
    %v95 = vld [vmem:[%s1 + $0x8] sm:$0xf]
    %v96 = vld [vmem:[%s1 + $0xc] sm:$0xf]
    %v97 = vld [vmem:[%s1 + $0x10] sm:$0xf]
    %v98 = vld [vmem:[%s1 + $0x14] sm:$0xf]
    %v99 = vld [vmem:[%s1 + $0x18] sm:$0xf]
    %v100 = vld [vmem:[%s1 + $0x1c] sm:$0xf]
    %v101 = vld [vmem:[%s1 + $0x20] sm:$0xf]
    %v102 = vld [vmem:[%s1 + $0x24] sm:$0xf]
    %v103 = vld [vmem:[%s1 + $0x28] sm:$0xf]
    %v104 = vld [vmem:[%s1 + $0x2c] sm:$0xf]
    %v105 = vld [vmem:[%s1 + $0x30] sm:$0xf]
    %v106 = vld [vmem:[%s1 + $0x34] sm:$0xf]
    %v107 = vld [vmem:[%s1 + $0x38] sm:$0xf]
    %v108 = vld [vmem:[%s1 + $0x3c] sm:$0xf]
    %v109 = vld [vmem:[%s1 + $0x40] sm:$0xf]
    %v110 = vld [vmem:[%s1 + $0x44] sm:$0xf]
    %v111 = vld [vmem:[%s1 + $0x48] sm:$0xf]
    %v112 = vld [vmem:[%s1 + $0x4c] sm:$0xf]
    %v113 = vld [vmem:[%s1 + $0x50] sm:$0xf]
    %v114 = vld [vmem:[%s1 + $0x54] sm:$0xf]
    %v115 = vld [vmem:[%s1 + $0x58] sm:$0xf]
    %v116 = vld [vmem:[%s1 + $0x5c] sm:$0xf]
    %v117 = vld [vmem:[%s1 + $0x60] sm:$0xf]
    %v118 = vld [vmem:[%s1 + $0x64] sm:$0xf]
    %v119 = vld [vmem:[%s1 + $0x68] sm:$0xf]
    %v120 = vld [vmem:[%s1 + $0x6c] sm:$0xf]
    %v121 = vld [vmem:[%s1 + $0x70] sm:$0xf]
    %v122 = vld [vmem:[%s1 + $0x74] sm:$0xf]
    %v123 = vld [vmem:[%s1 + $0x78] sm:$0xf]
    %v124 = vld [vmem:[%s1 + $0x7c] sm:$0xf]
    %v125 = vld [vmem:[%s2] sm:$0x1]
    %v127 = vlaneseq
    %v128 = vshrl.u32 %v127, 7
    %v129 = vsub.s32 0, %v128
    %v130 = vrot.slane %v125, %v129
    %v196 = vunpack.c.l.b16 %v29
    %v197 = vunpack.c.h.b16 %v29
    %v198 = vunpack.c.l.b16 %v30
    %v199 = vunpack.c.h.b16 %v30
    %v200 = vunpack.c.l.b16 %v31
    %v201 = vunpack.c.h.b16 %v31
    %v202 = vunpack.c.l.b16 %v32
    %v203 = vunpack.c.h.b16 %v32
    %v204 = vunpack.c.l.b16 %v33
    %v205 = vunpack.c.h.b16 %v33
    %v206 = vunpack.c.l.b16 %v34
    %v207 = vunpack.c.h.b16 %v34
    %v208 = vunpack.c.l.b16 %v35
    %v209 = vunpack.c.h.b16 %v35
    %v210 = vunpack.c.l.b16 %v36
    %v211 = vunpack.c.h.b16 %v36
    %v212 = vunpack.c.l.b16 %v37
    %v213 = vunpack.c.h.b16 %v37
    %v214 = vunpack.c.l.b16 %v38
    %v215 = vunpack.c.h.b16 %v38
    %v216 = vunpack.c.l.b16 %v39
    %v217 = vunpack.c.h.b16 %v39
    %v218 = vunpack.c.l.b16 %v40
    %v219 = vunpack.c.h.b16 %v40
    %v220 = vunpack.c.l.b16 %v41
    %v221 = vunpack.c.h.b16 %v41
    %v222 = vunpack.c.l.b16 %v42
    %v223 = vunpack.c.h.b16 %v42
    %v224 = vunpack.c.l.b16 %v43
    %v225 = vunpack.c.h.b16 %v43
    %v226 = vunpack.c.l.b16 %v44
    %v227 = vunpack.c.h.b16 %v44
    %v228 = vunpack.c.l.b16 %v45
    %v229 = vunpack.c.h.b16 %v45
    %v230 = vunpack.c.l.b16 %v46
    %v231 = vunpack.c.h.b16 %v46
    %v232 = vunpack.c.l.b16 %v47
    %v233 = vunpack.c.h.b16 %v47
    %v234 = vunpack.c.l.b16 %v48
    %v235 = vunpack.c.h.b16 %v48
    %v236 = vunpack.c.l.b16 %v49
    %v237 = vunpack.c.h.b16 %v49
    %v238 = vunpack.c.l.b16 %v50
    %v239 = vunpack.c.h.b16 %v50
    %v240 = vunpack.c.l.b16 %v51
    %v241 = vunpack.c.h.b16 %v51
    %v242 = vunpack.c.l.b16 %v52
    %v243 = vunpack.c.h.b16 %v52
    %v244 = vunpack.c.l.b16 %v53
    %v245 = vunpack.c.h.b16 %v53
    %v246 = vunpack.c.l.b16 %v54
    %v247 = vunpack.c.h.b16 %v54
    %v248 = vunpack.c.l.b16 %v55
    %v249 = vunpack.c.h.b16 %v55
    %v250 = vunpack.c.l.b16 %v56
    %v251 = vunpack.c.h.b16 %v56
    %v252 = vunpack.c.l.b16 %v57
    %v253 = vunpack.c.h.b16 %v57
    %v254 = vunpack.c.l.b16 %v58
    %v255 = vunpack.c.h.b16 %v58
    %v256 = vunpack.c.l.b16 %v59
    %v257 = vunpack.c.h.b16 %v59
    %v258 = vunpack.c.l.b16 %v60
    %v259 = vunpack.c.h.b16 %v60
    %v260 = vunpack.c.l.b16 %v61
    %v261 = vunpack.c.h.b16 %v61
    %v262 = vunpack.c.l.b16 %v62
    %v263 = vunpack.c.h.b16 %v62
    %v264 = vunpack.c.l.b16 %v63
    %v265 = vunpack.c.h.b16 %v63
    %v266 = vunpack.c.l.b16 %v64
    %v267 = vunpack.c.h.b16 %v64
    %v268 = vunpack.c.l.b16 %v65
    %v269 = vunpack.c.h.b16 %v65
    %v270 = vunpack.c.l.b16 %v66
    %v271 = vunpack.c.h.b16 %v66
    %v272 = vunpack.c.l.b16 %v67
    %v273 = vunpack.c.h.b16 %v67
    %v274 = vunpack.c.l.b16 %v68
    %v275 = vunpack.c.h.b16 %v68
    %v276 = vunpack.c.l.b16 %v69
    %v277 = vunpack.c.h.b16 %v69
    %v278 = vunpack.c.l.b16 %v70
    %v279 = vunpack.c.h.b16 %v70
    %v280 = vunpack.c.l.b16 %v71
    %v281 = vunpack.c.h.b16 %v71
    %v282 = vunpack.c.l.b16 %v72
    %v283 = vunpack.c.h.b16 %v72
    %v284 = vunpack.c.l.b16 %v73
    %v285 = vunpack.c.h.b16 %v73
    %v286 = vunpack.c.l.b16 %v74
    %v287 = vunpack.c.h.b16 %v74
    %v288 = vunpack.c.l.b16 %v75
    %v289 = vunpack.c.h.b16 %v75
    %v290 = vunpack.c.l.b16 %v76
    %v291 = vunpack.c.h.b16 %v76
    %v292 = vunpack.c.l.b16 %v77
    %v293 = vunpack.c.h.b16 %v77
    %v294 = vunpack.c.l.b16 %v78
    %v295 = vunpack.c.h.b16 %v78
    %v296 = vunpack.c.l.b16 %v79
    %v297 = vunpack.c.h.b16 %v79
    %v298 = vunpack.c.l.b16 %v80
    %v299 = vunpack.c.h.b16 %v80
    %v300 = vunpack.c.l.b16 %v81
    %v301 = vunpack.c.h.b16 %v81
    %v302 = vunpack.c.l.b16 %v82
    %v303 = vunpack.c.h.b16 %v82
    %v304 = vunpack.c.l.b16 %v83
    %v305 = vunpack.c.h.b16 %v83
    %v306 = vunpack.c.l.b16 %v84
    %v307 = vunpack.c.h.b16 %v84
    %v308 = vunpack.c.l.b16 %v85
    %v309 = vunpack.c.h.b16 %v85
    %v310 = vunpack.c.l.b16 %v86
    %v311 = vunpack.c.h.b16 %v86
    %v312 = vunpack.c.l.b16 %v87
    %v313 = vunpack.c.h.b16 %v87
    %v314 = vunpack.c.l.b16 %v88
    %v315 = vunpack.c.h.b16 %v88
    %v316 = vunpack.c.l.b16 %v89
    %v317 = vunpack.c.h.b16 %v89
    %v318 = vunpack.c.l.b16 %v90
    %v319 = vunpack.c.h.b16 %v90
    %v320 = vunpack.c.l.b16 %v91
    %v321 = vunpack.c.h.b16 %v91
    %v322 = vunpack.c.l.b16 %v92
    %v323 = vunpack.c.h.b16 %v92
    %v324 = vpack.c.b16 %v198, %v196
    %v325 = vpack.c.b16 %v199, %v197
    %v326 = vpack.c.b16 %v202, %v200
    %v327 = vpack.c.b16 %v203, %v201
    %v328 = vpack.c.b16 %v206, %v204
    %v329 = vpack.c.b16 %v207, %v205
    %v330 = vpack.c.b16 %v210, %v208
    %v331 = vpack.c.b16 %v211, %v209
    %v332 = vpack.c.b16 %v214, %v212
    %v333 = vpack.c.b16 %v215, %v213
    %v334 = vpack.c.b16 %v218, %v216
    %v335 = vpack.c.b16 %v219, %v217
    %v336 = vpack.c.b16 %v222, %v220
    %v337 = vpack.c.b16 %v223, %v221
    %v338 = vpack.c.b16 %v226, %v224
    %v339 = vpack.c.b16 %v227, %v225
    %v340 = vpack.c.b16 %v230, %v228
    %v341 = vpack.c.b16 %v231, %v229
    %v342 = vpack.c.b16 %v234, %v232
    %v343 = vpack.c.b16 %v235, %v233
    %v344 = vpack.c.b16 %v238, %v236
    %v345 = vpack.c.b16 %v239, %v237
    %v346 = vpack.c.b16 %v242, %v240
    %v347 = vpack.c.b16 %v243, %v241
    %v348 = vpack.c.b16 %v246, %v244
    %v349 = vpack.c.b16 %v247, %v245
    %v350 = vpack.c.b16 %v250, %v248
    %v351 = vpack.c.b16 %v251, %v249
    %v352 = vpack.c.b16 %v254, %v252
    %v353 = vpack.c.b16 %v255, %v253
    %v354 = vpack.c.b16 %v258, %v256
    %v355 = vpack.c.b16 %v259, %v257
    %v356 = vpack.c.b16 %v262, %v260
    %v357 = vpack.c.b16 %v263, %v261
    %v358 = vpack.c.b16 %v266, %v264
    %v359 = vpack.c.b16 %v267, %v265
    %v360 = vpack.c.b16 %v270, %v268
    %v361 = vpack.c.b16 %v271, %v269
    %v362 = vpack.c.b16 %v274, %v272
    %v363 = vpack.c.b16 %v275, %v273
    %v364 = vpack.c.b16 %v278, %v276
    %v365 = vpack.c.b16 %v279, %v277
    %v366 = vpack.c.b16 %v282, %v280
    %v367 = vpack.c.b16 %v283, %v281
    %v368 = vpack.c.b16 %v286, %v284
    %v369 = vpack.c.b16 %v287, %v285
    %v370 = vpack.c.b16 %v290, %v288
    %v371 = vpack.c.b16 %v291, %v289
    %v372 = vpack.c.b16 %v294, %v292
    %v373 = vpack.c.b16 %v295, %v293
    %v374 = vpack.c.b16 %v298, %v296
    %v375 = vpack.c.b16 %v299, %v297
    %v376 = vpack.c.b16 %v302, %v300
    %v377 = vpack.c.b16 %v303, %v301
    %v378 = vpack.c.b16 %v306, %v304
    %v379 = vpack.c.b16 %v307, %v305
    %v380 = vpack.c.b16 %v310, %v308
    %v381 = vpack.c.b16 %v311, %v309
    %v382 = vpack.c.b16 %v314, %v312
    %v383 = vpack.c.b16 %v315, %v313
    %v384 = vpack.c.b16 %v318, %v316
    %v385 = vpack.c.b16 %v319, %v317
    %v386 = vpack.c.b16 %v322, %v320
    %v387 = vpack.c.b16 %v323, %v321
    %v484 = vunpack.c.l.b16 %v93
    %v485 = vunpack.c.l.b16 %v94
    %v486 = vunpack.c.l.b16 %v95
    %v487 = vunpack.c.l.b16 %v96
    %v488 = vunpack.c.l.b16 %v97
    %v489 = vunpack.c.l.b16 %v98
    %v490 = vunpack.c.l.b16 %v99
    %v491 = vunpack.c.l.b16 %v100
    %v492 = vunpack.c.l.b16 %v101
    %v493 = vunpack.c.l.b16 %v102
    %v494 = vunpack.c.l.b16 %v103
    %v495 = vunpack.c.l.b16 %v104
    %v496 = vunpack.c.l.b16 %v105
    %v497 = vunpack.c.l.b16 %v106
    %v498 = vunpack.c.l.b16 %v107
    %v499 = vunpack.c.l.b16 %v108
    %v500 = vunpack.c.l.b16 %v109
    %v501 = vunpack.c.l.b16 %v110
    %v502 = vunpack.c.l.b16 %v111
    %v503 = vunpack.c.l.b16 %v112
    %v504 = vunpack.c.l.b16 %v113
    %v505 = vunpack.c.l.b16 %v114
    %v506 = vunpack.c.l.b16 %v115
    %v507 = vunpack.c.l.b16 %v116
    %v508 = vunpack.c.l.b16 %v117
    %v509 = vunpack.c.l.b16 %v118
    %v510 = vunpack.c.l.b16 %v119
    %v511 = vunpack.c.l.b16 %v120
    %v512 = vunpack.c.l.b16 %v121
    %v513 = vunpack.c.l.b16 %v122
    %v514 = vunpack.c.l.b16 %v123
    %v515 = vunpack.c.l.b16 %v124
    %v516 = vpack.c.b16 %v485, %v484
    %v517 = vpack.c.b16 %v487, %v486
    %v518 = vpack.c.b16 %v489, %v488
    %v519 = vpack.c.b16 %v491, %v490
    %v520 = vpack.c.b16 %v493, %v492
    %v521 = vpack.c.b16 %v495, %v494
    %v522 = vpack.c.b16 %v497, %v496
    %v523 = vpack.c.b16 %v499, %v498
    %v524 = vpack.c.b16 %v501, %v500
    %v525 = vpack.c.b16 %v503, %v502
    %v526 = vpack.c.b16 %v505, %v504
    %v527 = vpack.c.b16 %v507, %v506
    %v528 = vpack.c.b16 %v509, %v508
    %v529 = vpack.c.b16 %v511, %v510
    %v530 = vpack.c.b16 %v513, %v512
    %v531 = vpack.c.b16 %v515, %v514
    %548 = vmatprep.subr.bf16.mxu0 0
    %549 = vmatpush1.bf16.msra.mxu0 %v516
    %550 = vmatprep.subr.bf16.mxu0 0
    %551 = vmatpush1.bf16.msra.mxu0 %v517
    %552 = vmatprep.subr.bf16.mxu0 0
    %553 = vmatpush1.bf16.msra.mxu0 %v518
    %554 = vmatprep.subr.bf16.mxu0 0
    %555 = vmatpush1.bf16.msra.mxu0 %v519
    %556 = vmatprep.subr.bf16.mxu0 0
    %557 = vmatpush1.bf16.msra.mxu0 %v520
    %558 = vmatprep.subr.bf16.mxu0 0
    %559 = vmatpush1.bf16.msra.mxu0 %v521
    %560 = vmatprep.subr.bf16.mxu0 0
    %561 = vmatpush1.bf16.msra.mxu0 %v522
    %562 = vmatprep.subr.bf16.mxu0 0
    %563 = vmatpush1.bf16.msra.mxu0 %v523
    %564 = vmatprep.subr.bf16.mxu0 0
    %565 = vmatpush1.bf16.msra.mxu0 %v524
    %566 = vmatprep.subr.bf16.mxu0 0
    %567 = vmatpush1.bf16.msra.mxu0 %v525
    %568 = vmatprep.subr.bf16.mxu0 0
    %569 = vmatpush1.bf16.msra.mxu0 %v526
    %570 = vmatprep.subr.bf16.mxu0 0
    %571 = vmatpush1.bf16.msra.mxu0 %v527
    %572 = vmatprep.subr.bf16.mxu0 0
    %573 = vmatpush1.bf16.msra.mxu0 %v528
    %574 = vmatprep.subr.bf16.mxu0 0
    %575 = vmatpush1.bf16.msra.mxu0 %v529
    %576 = vmatprep.subr.bf16.mxu0 0
    %577 = vmatpush1.bf16.msra.mxu0 %v530
    %578 = vmatprep.subr.bf16.mxu0 0
    %579 = vmatpush1.bf16.msra.mxu0 %v531
    %580 = vmatprep.mubr.bf16.mxu0 %v325
    %581 = vmatmul.mubr.bf16.gmra.mrb[0].mxu0 %v324
    %v582 = vpop.f32.mrb[0].mxu0
    %v583 = vadd.f32 %v130, %v582
    %v584 = vpop.f32.mrb[0].mxu0
    %v585 = vpop.f32.mrb[0].mxu0
    %v586 = vadd.f32 %v130, %v585
    %v587 = vpop.f32.mrb[0].mxu0
    %588 = vmatprep.mubr.bf16.mxu0 %v327
    %589 = vmatmul.mubr.bf16.gmra.mrb[0].mxu0 %v326
    %v590 = vpop.f32.mrb[0].mxu0
    %v591 = vadd.f32 %v130, %v590
    %v592 = vpop.f32.mrb[0].mxu0
    %v593 = vpop.f32.mrb[0].mxu0
    %v594 = vadd.f32 %v130, %v593
    %v595 = vpop.f32.mrb[0].mxu0
    %596 = vmatprep.mubr.bf16.mxu0 %v329
    %597 = vmatmul.mubr.bf16.gmra.mrb[0].mxu0 %v328
    %v598 = vpop.f32.mrb[0].mxu0
    %v599 = vadd.f32 %v130, %v598
    %v600 = vpop.f32.mrb[0].mxu0
    %v601 = vpop.f32.mrb[0].mxu0
    %v602 = vadd.f32 %v130, %v601
    %v603 = vpop.f32.mrb[0].mxu0
    %604 = vmatprep.mubr.bf16.mxu0 %v331
    %605 = vmatmul.mubr.bf16.gmra.mrb[0].mxu0 %v330
    %v606 = vpop.f32.mrb[0].mxu0
    %v607 = vadd.f32 %v130, %v606
    %v608 = vpop.f32.mrb[0].mxu0
    %v609 = vpop.f32.mrb[0].mxu0
    %v610 = vadd.f32 %v130, %v609
    %v611 = vpop.f32.mrb[0].mxu0
    %612 = vmatprep.mubr.bf16.mxu0 %v333
    %613 = vmatmul.mubr.bf16.gmra.mrb[0].mxu0 %v332
    %v614 = vpop.f32.mrb[0].mxu0
    %v615 = vadd.f32 %v130, %v614
    %v616 = vpop.f32.mrb[0].mxu0
    %v617 = vpop.f32.mrb[0].mxu0
    %v618 = vadd.f32 %v130, %v617
    %v619 = vpop.f32.mrb[0].mxu0
    %620 = vmatprep.mubr.bf16.mxu0 %v335
    %621 = vmatmul.mubr.bf16.gmra.mrb[0].mxu0 %v334
    %v622 = vpop.f32.mrb[0].mxu0
    %v623 = vadd.f32 %v130, %v622
    %v624 = vpop.f32.mrb[0].mxu0
    %v625 = vpop.f32.mrb[0].mxu0
    %v626 = vadd.f32 %v130, %v625
    %v627 = vpop.f32.mrb[0].mxu0
    %628 = vmatprep.mubr.bf16.mxu0 %v337
    %629 = vmatmul.mubr.bf16.gmra.mrb[0].mxu0 %v336
    %v630 = vpop.f32.mrb[0].mxu0
    %v631 = vadd.f32 %v130, %v630
    %v632 = vpop.f32.mrb[0].mxu0
    %v633 = vpop.f32.mrb[0].mxu0
    %v634 = vadd.f32 %v130, %v633
    %v635 = vpop.f32.mrb[0].mxu0
    %636 = vmatprep.mubr.bf16.mxu0 %v339
    %637 = vmatmul.mubr.bf16.gmra.mrb[0].mxu0 %v338
    %v638 = vpop.f32.mrb[0].mxu0
    %v639 = vadd.f32 %v130, %v638
    %v640 = vpop.f32.mrb[0].mxu0
    %v641 = vpop.f32.mrb[0].mxu0
    %v642 = vadd.f32 %v130, %v641
    %v643 = vpop.f32.mrb[0].mxu0
    %644 = vmatprep.mubr.bf16.mxu0 %v341
    %645 = vmatmul.mubr.bf16.gmra.mrb[0].mxu0 %v340
    %v646 = vpop.f32.mrb[0].mxu0
    %v647 = vadd.f32 %v130, %v646
    %v648 = vpop.f32.mrb[0].mxu0
    %v649 = vpop.f32.mrb[0].mxu0
    %v650 = vadd.f32 %v130, %v649
    %v651 = vpop.f32.mrb[0].mxu0
    %652 = vmatprep.mubr.bf16.mxu0 %v343
    %653 = vmatmul.mubr.bf16.gmra.mrb[0].mxu0 %v342
    %v654 = vpop.f32.mrb[0].mxu0
    %v655 = vadd.f32 %v130, %v654
    %v656 = vpop.f32.mrb[0].mxu0
    %v657 = vpop.f32.mrb[0].mxu0
    %v658 = vadd.f32 %v130, %v657
    %v659 = vpop.f32.mrb[0].mxu0
    %660 = vmatprep.mubr.bf16.mxu0 %v345
    %661 = vmatmul.mubr.bf16.gmra.mrb[0].mxu0 %v344
    %v662 = vpop.f32.mrb[0].mxu0
    %v663 = vadd.f32 %v130, %v662
    %v664 = vpop.f32.mrb[0].mxu0
    %v665 = vpop.f32.mrb[0].mxu0
    %v666 = vadd.f32 %v130, %v665
    %v667 = vpop.f32.mrb[0].mxu0
    %668 = vmatprep.mubr.bf16.mxu0 %v347
    %669 = vmatmul.mubr.bf16.gmra.mrb[0].mxu0 %v346
    %v670 = vpop.f32.mrb[0].mxu0
    %v671 = vadd.f32 %v130, %v670
    %v672 = vpop.f32.mrb[0].mxu0
    %v673 = vpop.f32.mrb[0].mxu0
    %v674 = vadd.f32 %v130, %v673
    %v675 = vpop.f32.mrb[0].mxu0
    %676 = vmatprep.mubr.bf16.mxu0 %v349
    %677 = vmatmul.mubr.bf16.gmra.mrb[0].mxu0 %v348
    %v678 = vpop.f32.mrb[0].mxu0
    %v679 = vadd.f32 %v130, %v678
    %v680 = vpop.f32.mrb[0].mxu0
    %v681 = vpop.f32.mrb[0].mxu0
    %v682 = vadd.f32 %v130, %v681
    %v683 = vpop.f32.mrb[0].mxu0
    %684 = vmatprep.mubr.bf16.mxu0 %v351
    %685 = vmatmul.mubr.bf16.gmra.mrb[0].mxu0 %v350
    %v686 = vpop.f32.mrb[0].mxu0
    %v687 = vadd.f32 %v130, %v686
    %v688 = vpop.f32.mrb[0].mxu0
    %v689 = vpop.f32.mrb[0].mxu0
    %v690 = vadd.f32 %v130, %v689
    %v691 = vpop.f32.mrb[0].mxu0
    %692 = vmatprep.mubr.bf16.mxu0 %v353
    %693 = vmatmul.mubr.bf16.gmra.mrb[0].mxu0 %v352
    %v694 = vpop.f32.mrb[0].mxu0
    %v695 = vadd.f32 %v130, %v694
    %v696 = vpop.f32.mrb[0].mxu0
    %v697 = vpop.f32.mrb[0].mxu0
    %v698 = vadd.f32 %v130, %v697
    %v699 = vpop.f32.mrb[0].mxu0
    %700 = vmatprep.mubr.bf16.mxu0 %v355
    %701 = vmatmul.mubr.bf16.gmra.mrb[0].mxu0 %v354
    %v702 = vpop.f32.mrb[0].mxu0
    %v703 = vadd.f32 %v130, %v702
    %v704 = vpop.f32.mrb[0].mxu0
    %v705 = vpop.f32.mrb[0].mxu0
    %v706 = vadd.f32 %v130, %v705
    %v707 = vpop.f32.mrb[0].mxu0
    %708 = vmatprep.mubr.bf16.mxu0 %v357
    %709 = vmatmul.mubr.bf16.gmra.mrb[0].mxu0 %v356
    %v710 = vpop.f32.mrb[0].mxu0
    %v711 = vadd.f32 %v130, %v710
    %v712 = vpop.f32.mrb[0].mxu0
    %v713 = vpop.f32.mrb[0].mxu0
    %v714 = vadd.f32 %v130, %v713
    %v715 = vpop.f32.mrb[0].mxu0
    %716 = vmatprep.mubr.bf16.mxu0 %v359
    %717 = vmatmul.mubr.bf16.gmra.mrb[0].mxu0 %v358
    %v718 = vpop.f32.mrb[0].mxu0
    %v719 = vadd.f32 %v130, %v718
    %v720 = vpop.f32.mrb[0].mxu0
    %v721 = vpop.f32.mrb[0].mxu0
    %v722 = vadd.f32 %v130, %v721
    %v723 = vpop.f32.mrb[0].mxu0
    %724 = vmatprep.mubr.bf16.mxu0 %v361
    %725 = vmatmul.mubr.bf16.gmra.mrb[0].mxu0 %v360
    %v726 = vpop.f32.mrb[0].mxu0
    %v727 = vadd.f32 %v130, %v726
    %v728 = vpop.f32.mrb[0].mxu0
    %v729 = vpop.f32.mrb[0].mxu0
    %v730 = vadd.f32 %v130, %v729
    %v731 = vpop.f32.mrb[0].mxu0
    %732 = vmatprep.mubr.bf16.mxu0 %v363
    %733 = vmatmul.mubr.bf16.gmra.mrb[0].mxu0 %v362
    %v734 = vpop.f32.mrb[0].mxu0
    %v735 = vadd.f32 %v130, %v734
    %v736 = vpop.f32.mrb[0].mxu0
    %v737 = vpop.f32.mrb[0].mxu0
    %v738 = vadd.f32 %v130, %v737
    %v739 = vpop.f32.mrb[0].mxu0
    %740 = vmatprep.mubr.bf16.mxu0 %v365
    %741 = vmatmul.mubr.bf16.gmra.mrb[0].mxu0 %v364
    %v742 = vpop.f32.mrb[0].mxu0
    %v743 = vadd.f32 %v130, %v742
    %v744 = vpop.f32.mrb[0].mxu0
    %v745 = vpop.f32.mrb[0].mxu0
    %v746 = vadd.f32 %v130, %v745
    %v747 = vpop.f32.mrb[0].mxu0
    %748 = vmatprep.mubr.bf16.mxu0 %v367
    %749 = vmatmul.mubr.bf16.gmra.mrb[0].mxu0 %v366
    %v750 = vpop.f32.mrb[0].mxu0
    %v751 = vadd.f32 %v130, %v750
    %v752 = vpop.f32.mrb[0].mxu0
    %v753 = vpop.f32.mrb[0].mxu0
    %v754 = vadd.f32 %v130, %v753
    %v755 = vpop.f32.mrb[0].mxu0
    %756 = vmatprep.mubr.bf16.mxu0 %v369
    %757 = vmatmul.mubr.bf16.gmra.mrb[0].mxu0 %v368
    %v758 = vpop.f32.mrb[0].mxu0
    %v759 = vadd.f32 %v130, %v758
    %v760 = vpop.f32.mrb[0].mxu0
    %v761 = vpop.f32.mrb[0].mxu0
    %v762 = vadd.f32 %v130, %v761
    %v763 = vpop.f32.mrb[0].mxu0
    %764 = vmatprep.mubr.bf16.mxu0 %v371
    %765 = vmatmul.mubr.bf16.gmra.mrb[0].mxu0 %v370
    %v766 = vpop.f32.mrb[0].mxu0
    %v767 = vadd.f32 %v130, %v766
    %v768 = vpop.f32.mrb[0].mxu0
    %v769 = vpop.f32.mrb[0].mxu0
    %v770 = vadd.f32 %v130, %v769
    %v771 = vpop.f32.mrb[0].mxu0
    %772 = vmatprep.mubr.bf16.mxu0 %v373
    %773 = vmatmul.mubr.bf16.gmra.mrb[0].mxu0 %v372
    %v774 = vpop.f32.mrb[0].mxu0
    %v775 = vadd.f32 %v130, %v774
    %v776 = vpop.f32.mrb[0].mxu0
    %v777 = vpop.f32.mrb[0].mxu0
    %v778 = vadd.f32 %v130, %v777
    %v779 = vpop.f32.mrb[0].mxu0
    %780 = vmatprep.mubr.bf16.mxu0 %v375
    %781 = vmatmul.mubr.bf16.gmra.mrb[0].mxu0 %v374
    %v782 = vpop.f32.mrb[0].mxu0
    %v783 = vadd.f32 %v130, %v782
    %v784 = vpop.f32.mrb[0].mxu0
    %v785 = vpop.f32.mrb[0].mxu0
    %v786 = vadd.f32 %v130, %v785
    %v787 = vpop.f32.mrb[0].mxu0
    %788 = vmatprep.mubr.bf16.mxu0 %v377
    %789 = vmatmul.mubr.bf16.gmra.mrb[0].mxu0 %v376
    %v790 = vpop.f32.mrb[0].mxu0
    %v791 = vadd.f32 %v130, %v790
    %v792 = vpop.f32.mrb[0].mxu0
    %v793 = vpop.f32.mrb[0].mxu0
    %v794 = vadd.f32 %v130, %v793
    %v795 = vpop.f32.mrb[0].mxu0
    %796 = vmatprep.mubr.bf16.mxu0 %v379
    %797 = vmatmul.mubr.bf16.gmra.mrb[0].mxu0 %v378
    %v798 = vpop.f32.mrb[0].mxu0
    %v799 = vadd.f32 %v130, %v798
    %v800 = vpop.f32.mrb[0].mxu0
    %v801 = vpop.f32.mrb[0].mxu0
    %v802 = vadd.f32 %v130, %v801
    %v803 = vpop.f32.mrb[0].mxu0
    %804 = vmatprep.mubr.bf16.mxu0 %v381
    %805 = vmatmul.mubr.bf16.gmra.mrb[0].mxu0 %v380
    %v806 = vpop.f32.mrb[0].mxu0
    %v807 = vadd.f32 %v130, %v806
    %v808 = vpop.f32.mrb[0].mxu0
    %v809 = vpop.f32.mrb[0].mxu0
    %v810 = vadd.f32 %v130, %v809
    %v811 = vpop.f32.mrb[0].mxu0
    %812 = vmatprep.mubr.bf16.mxu0 %v383
    %813 = vmatmul.mubr.bf16.gmra.mrb[0].mxu0 %v382
    %v814 = vpop.f32.mrb[0].mxu0
    %v815 = vadd.f32 %v130, %v814
    %v816 = vpop.f32.mrb[0].mxu0
    %v817 = vpop.f32.mrb[0].mxu0
    %v818 = vadd.f32 %v130, %v817
    %v819 = vpop.f32.mrb[0].mxu0
    %820 = vmatprep.mubr.bf16.mxu0 %v385
    %821 = vmatmul.mubr.bf16.gmra.mrb[0].mxu0 %v384
    %v822 = vpop.f32.mrb[0].mxu0
    %v823 = vadd.f32 %v130, %v822
    %v824 = vpop.f32.mrb[0].mxu0
    %v825 = vpop.f32.mrb[0].mxu0
    %v826 = vadd.f32 %v130, %v825
    %v827 = vpop.f32.mrb[0].mxu0
    %828 = vmatprep.mubr.bf16.mxu0 %v387
    %829 = vmatmul.mubr.bf16.gmra.mrb[0].mxu0 %v386
    %v830 = vpop.f32.mrb[0].mxu0
    %v831 = vadd.f32 %v130, %v830
    %v832 = vpop.f32.mrb[0].mxu0
    %v833 = vpop.f32.mrb[0].mxu0
    %v834 = vadd.f32 %v130, %v833
    %v835 = vpop.f32.mrb[0].mxu0
    %836 = vdwg.mxu0
    %vm837 = vcmp.ge.f32.partialorder %v583, 0.0
    %vm838 = vcmp.ge.f32.partialorder %v586, 0.0
    %vm839 = vcmp.ge.f32.partialorder %v591, 0.0
    %vm840 = vcmp.ge.f32.partialorder %v594, 0.0
    %vm841 = vcmp.ge.f32.partialorder %v599, 0.0
    %vm842 = vcmp.ge.f32.partialorder %v602, 0.0
    %vm843 = vcmp.ge.f32.partialorder %v607, 0.0
    %vm844 = vcmp.ge.f32.partialorder %v610, 0.0
    %vm845 = vcmp.ge.f32.partialorder %v615, 0.0
    %vm846 = vcmp.ge.f32.partialorder %v618, 0.0
    %vm847 = vcmp.ge.f32.partialorder %v623, 0.0
    %vm848 = vcmp.ge.f32.partialorder %v626, 0.0
    %vm849 = vcmp.ge.f32.partialorder %v631, 0.0
    %vm850 = vcmp.ge.f32.partialorder %v634, 0.0
    %vm851 = vcmp.ge.f32.partialorder %v639, 0.0
    %vm852 = vcmp.ge.f32.partialorder %v642, 0.0
    %vm853 = vcmp.ge.f32.partialorder %v647, 0.0
    %vm854 = vcmp.ge.f32.partialorder %v650, 0.0
    %vm855 = vcmp.ge.f32.partialorder %v655, 0.0
    %vm856 = vcmp.ge.f32.partialorder %v658, 0.0
    %vm857 = vcmp.ge.f32.partialorder %v663, 0.0
    %vm858 = vcmp.ge.f32.partialorder %v666, 0.0
    %vm859 = vcmp.ge.f32.partialorder %v671, 0.0
    %vm860 = vcmp.ge.f32.partialorder %v674, 0.0
    %vm861 = vcmp.ge.f32.partialorder %v679, 0.0
    %vm862 = vcmp.ge.f32.partialorder %v682, 0.0
    %vm863 = vcmp.ge.f32.partialorder %v687, 0.0
    %vm864 = vcmp.ge.f32.partialorder %v690, 0.0
    %vm865 = vcmp.ge.f32.partialorder %v695, 0.0
    %vm866 = vcmp.ge.f32.partialorder %v698, 0.0
    %vm867 = vcmp.ge.f32.partialorder %v703, 0.0
    %vm868 = vcmp.ge.f32.partialorder %v706, 0.0
    %vm869 = vcmp.ge.f32.partialorder %v711, 0.0
    %vm870 = vcmp.ge.f32.partialorder %v714, 0.0
    %vm871 = vcmp.ge.f32.partialorder %v719, 0.0
    %vm872 = vcmp.ge.f32.partialorder %v722, 0.0
    %vm873 = vcmp.ge.f32.partialorder %v727, 0.0
    %vm874 = vcmp.ge.f32.partialorder %v730, 0.0
    %vm875 = vcmp.ge.f32.partialorder %v735, 0.0
    %vm876 = vcmp.ge.f32.partialorder %v738, 0.0
    %vm877 = vcmp.ge.f32.partialorder %v743, 0.0
    %vm878 = vcmp.ge.f32.partialorder %v746, 0.0
    %vm879 = vcmp.ge.f32.partialorder %v751, 0.0
    %vm880 = vcmp.ge.f32.partialorder %v754, 0.0
    %vm881 = vcmp.ge.f32.partialorder %v759, 0.0
    %vm882 = vcmp.ge.f32.partialorder %v762, 0.0
    %vm883 = vcmp.ge.f32.partialorder %v767, 0.0
    %vm884 = vcmp.ge.f32.partialorder %v770, 0.0
    %vm885 = vcmp.ge.f32.partialorder %v775, 0.0
    %vm886 = vcmp.ge.f32.partialorder %v778, 0.0
    %vm887 = vcmp.ge.f32.partialorder %v783, 0.0
    %vm888 = vcmp.ge.f32.partialorder %v786, 0.0
    %vm889 = vcmp.ge.f32.partialorder %v791, 0.0
    %vm890 = vcmp.ge.f32.partialorder %v794, 0.0
    %vm891 = vcmp.ge.f32.partialorder %v799, 0.0
    %vm892 = vcmp.ge.f32.partialorder %v802, 0.0
    %vm893 = vcmp.ge.f32.partialorder %v807, 0.0
    %vm894 = vcmp.ge.f32.partialorder %v810, 0.0
    %vm895 = vcmp.ge.f32.partialorder %v815, 0.0
    %vm896 = vcmp.ge.f32.partialorder %v818, 0.0
    %vm897 = vcmp.ge.f32.partialorder %v823, 0.0
    %vm898 = vcmp.ge.f32.partialorder %v826, 0.0
    %vm899 = vcmp.ge.f32.partialorder %v831, 0.0
    %vm900 = vcmp.ge.f32.partialorder %v834, 0.0
    %v901 = vmul.f32 %v583, 0.2
    %v902 = vmul.f32 %v586, 0.2
    %v903 = vmul.f32 %v591, 0.2
    %v904 = vmul.f32 %v594, 0.2
    %v905 = vmul.f32 %v599, 0.2
    %v906 = vmul.f32 %v602, 0.2
    %v907 = vmul.f32 %v607, 0.2
    %v908 = vmul.f32 %v610, 0.2
    %v909 = vmul.f32 %v615, 0.2
    %v910 = vmul.f32 %v618, 0.2
    %v911 = vmul.f32 %v623, 0.2
    %v912 = vmul.f32 %v626, 0.2
    %v913 = vmul.f32 %v631, 0.2
    %v914 = vmul.f32 %v634, 0.2
    %v915 = vmul.f32 %v639, 0.2
    %v916 = vmul.f32 %v642, 0.2
    %v917 = vmul.f32 %v647, 0.2
    %v918 = vmul.f32 %v650, 0.2
    %v919 = vmul.f32 %v655, 0.2
    %v920 = vmul.f32 %v658, 0.2
    %v921 = vmul.f32 %v663, 0.2
    %v922 = vmul.f32 %v666, 0.2
    %v923 = vmul.f32 %v671, 0.2
    %v924 = vmul.f32 %v674, 0.2
    %v925 = vmul.f32 %v679, 0.2
    %v926 = vmul.f32 %v682, 0.2
    %v927 = vmul.f32 %v687, 0.2
    %v928 = vmul.f32 %v690, 0.2
    %v929 = vmul.f32 %v695, 0.2
    %v930 = vmul.f32 %v698, 0.2
    %v931 = vmul.f32 %v703, 0.2
    %v932 = vmul.f32 %v706, 0.2
    %v933 = vmul.f32 %v711, 0.2
    %v934 = vmul.f32 %v714, 0.2
    %v935 = vmul.f32 %v719, 0.2
    %v936 = vmul.f32 %v722, 0.2
    %v937 = vmul.f32 %v727, 0.2
    %v938 = vmul.f32 %v730, 0.2
    %v939 = vmul.f32 %v735, 0.2
    %v940 = vmul.f32 %v738, 0.2
    %v941 = vmul.f32 %v743, 0.2
    %v942 = vmul.f32 %v746, 0.2
    %v943 = vmul.f32 %v751, 0.2
    %v944 = vmul.f32 %v754, 0.2
    %v945 = vmul.f32 %v759, 0.2
    %v946 = vmul.f32 %v762, 0.2
    %v947 = vmul.f32 %v767, 0.2
    %v948 = vmul.f32 %v770, 0.2
    %v949 = vmul.f32 %v775, 0.2
    %v950 = vmul.f32 %v778, 0.2
    %v951 = vmul.f32 %v783, 0.2
    %v952 = vmul.f32 %v786, 0.2
    %v953 = vmul.f32 %v791, 0.2
    %v954 = vmul.f32 %v794, 0.2
    %v955 = vmul.f32 %v799, 0.2
    %v956 = vmul.f32 %v802, 0.2
    %v957 = vmul.f32 %v807, 0.2
    %v958 = vmul.f32 %v810, 0.2
    %v959 = vmul.f32 %v815, 0.2
    %v960 = vmul.f32 %v818, 0.2
    %v961 = vmul.f32 %v823, 0.2
    %v962 = vmul.f32 %v826, 0.2
    %v963 = vmul.f32 %v831, 0.2
    %v964 = vmul.f32 %v834, 0.2
    %v965 = vsel %vm837, %v583, %v901
    %v966 = vsel %vm838, %v586, %v902
    %v967 = vsel %vm839, %v591, %v903
    %v968 = vsel %vm840, %v594, %v904
    %v969 = vsel %vm841, %v599, %v905
    %v970 = vsel %vm842, %v602, %v906
    %v971 = vsel %vm843, %v607, %v907
    %v972 = vsel %vm844, %v610, %v908
    %v973 = vsel %vm845, %v615, %v909
    %v974 = vsel %vm846, %v618, %v910
    %v975 = vsel %vm847, %v623, %v911
    %v976 = vsel %vm848, %v626, %v912
    %v977 = vsel %vm849, %v631, %v913
    %v978 = vsel %vm850, %v634, %v914
    %v979 = vsel %vm851, %v639, %v915
    %v980 = vsel %vm852, %v642, %v916
    %v981 = vsel %vm853, %v647, %v917
    %v982 = vsel %vm854, %v650, %v918
    %v983 = vsel %vm855, %v655, %v919
    %v984 = vsel %vm856, %v658, %v920
    %v985 = vsel %vm857, %v663, %v921
    %v986 = vsel %vm858, %v666, %v922
    %v987 = vsel %vm859, %v671, %v923
    %v988 = vsel %vm860, %v674, %v924
    %v989 = vsel %vm861, %v679, %v925
    %v990 = vsel %vm862, %v682, %v926
    %v991 = vsel %vm863, %v687, %v927
    %v992 = vsel %vm864, %v690, %v928
    %v993 = vsel %vm865, %v695, %v929
    %v994 = vsel %vm866, %v698, %v930
    %v995 = vsel %vm867, %v703, %v931
    %v996 = vsel %vm868, %v706, %v932
    %v997 = vsel %vm869, %v711, %v933
    %v998 = vsel %vm870, %v714, %v934
    %v999 = vsel %vm871, %v719, %v935
    %v1000 = vsel %vm872, %v722, %v936
    %v1001 = vsel %vm873, %v727, %v937
    %v1002 = vsel %vm874, %v730, %v938
    %v1003 = vsel %vm875, %v735, %v939
    %v1004 = vsel %vm876, %v738, %v940
    %v1005 = vsel %vm877, %v743, %v941
    %v1006 = vsel %vm878, %v746, %v942
    %v1007 = vsel %vm879, %v751, %v943
    %v1008 = vsel %vm880, %v754, %v944
    %v1009 = vsel %vm881, %v759, %v945
    %v1010 = vsel %vm882, %v762, %v946
    %v1011 = vsel %vm883, %v767, %v947
    %v1012 = vsel %vm884, %v770, %v948
    %v1013 = vsel %vm885, %v775, %v949
    %v1014 = vsel %vm886, %v778, %v950
    %v1015 = vsel %vm887, %v783, %v951
    %v1016 = vsel %vm888, %v786, %v952
    %v1017 = vsel %vm889, %v791, %v953
    %v1018 = vsel %vm890, %v794, %v954
    %v1019 = vsel %vm891, %v799, %v955
    %v1020 = vsel %vm892, %v802, %v956
    %v1021 = vsel %vm893, %v807, %v957
    %v1022 = vsel %vm894, %v810, %v958
    %v1023 = vsel %vm895, %v815, %v959
    %v1024 = vsel %vm896, %v818, %v960
    %v1025 = vsel %vm897, %v823, %v961
    %v1026 = vsel %vm898, %v826, %v962
    %v1027 = vsel %vm899, %v831, %v963
    %v1028 = vsel %vm900, %v834, %v964
    %vm1029 = vcmask 523264
    %1030 = vst.msk [vmem:[%s3] sm:$0xff] %vm1029, %v965
    %1031 = vst.msk [vmem:[%s3 + $0x8] sm:$0xff] %vm1029, %v966
    %1032 = vst.msk [vmem:[%s3 + $0x10] sm:$0xff] %vm1029, %v967
    %1033 = vst.msk [vmem:[%s3 + $0x18] sm:$0xff] %vm1029, %v968
    %1034 = vst.msk [vmem:[%s3 + $0x20] sm:$0xff] %vm1029, %v969
    %1035 = vst.msk [vmem:[%s3 + $0x28] sm:$0xff] %vm1029, %v970
    %1036 = vst.msk [vmem:[%s3 + $0x30] sm:$0xff] %vm1029, %v971
    %1037 = vst.msk [vmem:[%s3 + $0x38] sm:$0xff] %vm1029, %v972
    %1038 = vst.msk [vmem:[%s3 + $0x40] sm:$0xff] %vm1029, %v973
    %1039 = vst.msk [vmem:[%s3 + $0x48] sm:$0xff] %vm1029, %v974
    %1040 = vst.msk [vmem:[%s3 + $0x50] sm:$0xff] %vm1029, %v975
    %1041 = vst.msk [vmem:[%s3 + $0x58] sm:$0xff] %vm1029, %v976
    %1042 = vst.msk [vmem:[%s3 + $0x60] sm:$0xff] %vm1029, %v977
    %1043 = vst.msk [vmem:[%s3 + $0x68] sm:$0xff] %vm1029, %v978
    %1044 = vst.msk [vmem:[%s3 + $0x70] sm:$0xff] %vm1029, %v979
    %1045 = vst.msk [vmem:[%s3 + $0x78] sm:$0xff] %vm1029, %v980
    %1046 = vst.msk [vmem:[%s3 + $0x80] sm:$0xff] %vm1029, %v981
    %1047 = vst.msk [vmem:[%s3 + $0x88] sm:$0xff] %vm1029, %v982
    %1048 = vst.msk [vmem:[%s3 + $0x90] sm:$0xff] %vm1029, %v983
    %1049 = vst.msk [vmem:[%s3 + $0x98] sm:$0xff] %vm1029, %v984
    %1050 = vst.msk [vmem:[%s3 + $0xa0] sm:$0xff] %vm1029, %v985
    %1051 = vst.msk [vmem:[%s3 + $0xa8] sm:$0xff] %vm1029, %v986
    %1052 = vst.msk [vmem:[%s3 + $0xb0] sm:$0xff] %vm1029, %v987
    %1053 = vst.msk [vmem:[%s3 + $0xb8] sm:$0xff] %vm1029, %v988
    %1054 = vst.msk [vmem:[%s3 + $0xc0] sm:$0xff] %vm1029, %v989
    %1055 = vst.msk [vmem:[%s3 + $0xc8] sm:$0xff] %vm1029, %v990
    %1056 = vst.msk [vmem:[%s3 + $0xd0] sm:$0xff] %vm1029, %v991
    %1057 = vst.msk [vmem:[%s3 + $0xd8] sm:$0xff] %vm1029, %v992
    %1058 = vst.msk [vmem:[%s3 + $0xe0] sm:$0xff] %vm1029, %v993
    %1059 = vst.msk [vmem:[%s3 + $0xe8] sm:$0xff] %vm1029, %v994
    %1060 = vst.msk [vmem:[%s3 + $0xf0] sm:$0xff] %vm1029, %v995
    %1061 = vst.msk [vmem:[%s3 + $0xf8] sm:$0xff] %vm1029, %v996
    %1062 = vst.msk [vmem:[%s3 + $0x100] sm:$0xff] %vm1029, %v997
    %1063 = vst.msk [vmem:[%s3 + $0x108] sm:$0xff] %vm1029, %v998
    %1064 = vst.msk [vmem:[%s3 + $0x110] sm:$0xff] %vm1029, %v999
    %1065 = vst.msk [vmem:[%s3 + $0x118] sm:$0xff] %vm1029, %v1000
    %1066 = vst.msk [vmem:[%s3 + $0x120] sm:$0xff] %vm1029, %v1001
    %1067 = vst.msk [vmem:[%s3 + $0x128] sm:$0xff] %vm1029, %v1002
    %1068 = vst.msk [vmem:[%s3 + $0x130] sm:$0xff] %vm1029, %v1003
    %1069 = vst.msk [vmem:[%s3 + $0x138] sm:$0xff] %vm1029, %v1004
    %1070 = vst.msk [vmem:[%s3 + $0x140] sm:$0xff] %vm1029, %v1005
    %1071 = vst.msk [vmem:[%s3 + $0x148] sm:$0xff] %vm1029, %v1006
    %1072 = vst.msk [vmem:[%s3 + $0x150] sm:$0xff] %vm1029, %v1007
    %1073 = vst.msk [vmem:[%s3 + $0x158] sm:$0xff] %vm1029, %v1008
    %1074 = vst.msk [vmem:[%s3 + $0x160] sm:$0xff] %vm1029, %v1009
    %1075 = vst.msk [vmem:[%s3 + $0x168] sm:$0xff] %vm1029, %v1010
    %1076 = vst.msk [vmem:[%s3 + $0x170] sm:$0xff] %vm1029, %v1011
    %1077 = vst.msk [vmem:[%s3 + $0x178] sm:$0xff] %vm1029, %v1012
    %1078 = vst.msk [vmem:[%s3 + $0x180] sm:$0xff] %vm1029, %v1013
    %1079 = vst.msk [vmem:[%s3 + $0x188] sm:$0xff] %vm1029, %v1014
    %1080 = vst.msk [vmem:[%s3 + $0x190] sm:$0xff] %vm1029, %v1015
    %1081 = vst.msk [vmem:[%s3 + $0x198] sm:$0xff] %vm1029, %v1016
    %1082 = vst.msk [vmem:[%s3 + $0x1a0] sm:$0xff] %vm1029, %v1017
    %1083 = vst.msk [vmem:[%s3 + $0x1a8] sm:$0xff] %vm1029, %v1018
    %1084 = vst.msk [vmem:[%s3 + $0x1b0] sm:$0xff] %vm1029, %v1019
    %1085 = vst.msk [vmem:[%s3 + $0x1b8] sm:$0xff] %vm1029, %v1020
    %1086 = vst.msk [vmem:[%s3 + $0x1c0] sm:$0xff] %vm1029, %v1021
    %1087 = vst.msk [vmem:[%s3 + $0x1c8] sm:$0xff] %vm1029, %v1022
    %1088 = vst.msk [vmem:[%s3 + $0x1d0] sm:$0xff] %vm1029, %v1023
    %1089 = vst.msk [vmem:[%s3 + $0x1d8] sm:$0xff] %vm1029, %v1024
    %1090 = vst.msk [vmem:[%s3 + $0x1e0] sm:$0xff] %vm1029, %v1025
    %1091 = vst.msk [vmem:[%s3 + $0x1e8] sm:$0xff] %vm1029, %v1026
    %1092 = vst.msk [vmem:[%s3 + $0x1f0] sm:$0xff] %vm1029, %v1027
    %1093 = vst.msk [vmem:[%s3 + $0x1f8] sm:$0xff] %vm1029, %v1028
    // Predicated region
    $region18: #{tpu_custom_call.1} parent=1 // pred_check
      _
    $region19: #{tpu_custom_call.1} parent=1 // pred_check_branch
      %1095 = sbr.rel (0) target = $region21
    $region20: #{tpu_custom_call.1} parent=1 // pred_region
      _
    $region21: #{tpu_custom_call.1} parent=1 // pred_fallthru
      _
    // Predicated region
    $region22: #{tpu_custom_call.1} parent=1 // pred_check
      _
    $region23: #{tpu_custom_call.1} parent=1 // pred_check_branch
      %1097 = sbr.rel (0) target = $region25
    $region24: #{tpu_custom_call.1} parent=1 // pred_region
      _
    $region25: #{tpu_custom_call.1} parent=1 // pred_fallthru
      _
    %1098 = vsyncpa [#allocation3], 1

</llo_original>
